<compile_context>
chip_gen: v7x
topology: tpu7x:2x2x1
jax: 0.10.0
libtpu: 0.0.40
codegen_flags: <defaults>
</compile_context>

<pallas_src>
import jax
import jax.numpy as jnp
from jax.experimental import pallas as pl
from jax.experimental.pallas import tpu as pltpu


def _linear_kernel(x_ref, wt_ref, b_ref, o_ref):
    # x_ref: (TN, IN), wt_ref: (IN, OUT), b_ref: (1, OUT), o_ref: (TN, OUT)
    x = x_ref[...].astype(jnp.float32)
    wt = wt_ref[...].astype(jnp.float32)
    # Start the accumulator from the (broadcast) bias.
    acc = jnp.broadcast_to(b_ref[...].astype(jnp.float32), o_ref.shape)
    # K is tiny and static (3): unrolled VPU broadcast multiply-adds.
    # (TN, 1) * (1, OUT) -> (TN, OUT); no MXU push/pop, no cross-lane transpose.
    for k in range(wt.shape[0]):
        acc = acc + x[:, k:k + 1] * wt[k:k + 1, :]
    o_ref[...] = acc.astype(o_ref.dtype)


def _pick_row_tile(n: int) -> int:
    """Largest power-of-two row tile (<=1024) dividing n; else the full array."""
    if n % 8 != 0:
        return n  # full-array block is always legal
    for cand in (1024, 512, 256, 128, 64, 32, 16, 8):
        if cand <= n and n % cand == 0:
            return cand
    return n


def stage1_forward(x, w, b):
    """x: (N, IN) f32, w: (OUT, IN) f32 (PyTorch layout), b: (OUT,) f32 -> (N, OUT)."""
    n, in_f = x.shape
    out_f, _ = w.shape

    # Hoisted, one-time argument prep (not per grid step):
    wt = jnp.transpose(w)          # (IN, OUT) — kernel consumes W^T directly
    b2d = b.reshape(1, out_f)      # (1, OUT)

    tn = _pick_row_tile(n)
    grid = (n // tn,)

    return pl.pallas_call(
        _linear_kernel,
        out_shape=jax.ShapeDtypeStruct((n, out_f), x.dtype),
        grid=grid,
        in_specs=[
            pl.BlockSpec((tn, in_f), lambda i: (i, 0)),      # row-tiled activations
            pl.BlockSpec((in_f, out_f), lambda i: (0, 0)),   # W^T resident in VMEM
            pl.BlockSpec((1, out_f), lambda i: (0, 0)),      # bias resident in VMEM
        ],
        out_specs=pl.BlockSpec((tn, out_f), lambda i: (i, 0)),
        compiler_params=pltpu.CompilerParams(
            dimension_semantics=("parallel",),
        ),
    )(x, wt, b2d)


if __name__ == "__main__":
    key = jax.random.PRNGKey(0)
    kx, kw, kb = jax.random.split(key, 3)

    # Input matching the PyTorch example: x = torch.rand(5, 3)
    x = jax.random.uniform(kx, (5, 3), dtype=jnp.float32)

    # Deterministic parameter init (same shapes as nn.Linear(3, 4)):
    # PyTorch default init is U(-1/sqrt(in), 1/sqrt(in)).
    bound = 1.0 / jnp.sqrt(3.0)
    w = jax.random.uniform(kw, (4, 3), dtype=jnp.float32, minval=-bound, maxval=bound)
    b = jax.random.uniform(kb, (4,), dtype=jnp.float32, minval=-bound, maxval=bound)

    y = stage1_forward(x, w, b)
    y = jax.block_until_ready(y)

    # Sanity check against plain-JAX reference.
    y_ref = x @ w.T + b
    assert y.shape == (5, 4)
    assert jnp.allclose(y, y_ref, atol=1e-5), "mismatch vs reference"

    print("KERNEL_OK")
</pallas_src>

<mosaic_0001>
module attributes {stable_mosaic.version = 11 : i64} {
  func.func @_linear_kernel(%arg0: i32, %arg1: memref<5x3xf32, #tpu.memory_space<vmem>>, %arg2: memref<3x4xf32, #tpu.memory_space<vmem>>, %arg3: memref<1x4xf32, #tpu.memory_space<vmem>>, %arg4: memref<5x4xf32, #tpu.memory_space<vmem>>) attributes {dimension_semantics = [#tpu.dimension_semantics<parallel>], iteration_bounds = array<i64: 1>, scalar_prefetch = 0 : i64, scratch_operands = 0 : i64, tpu.core_type = #tpu.core_type<tc>, window_params = [{transform_indices = @transform_0, window_bounds = array<i64: 5, 3>}, {pipeline_mode = #tpu.pipeline_mode<synchronous>, transform_indices = @transform_1, window_bounds = array<i64: 3, 4>}, {pipeline_mode = #tpu.pipeline_mode<synchronous>, transform_indices = @transform_2, window_bounds = array<i64: 1, 4>}, {transform_indices = @transform_3, window_bounds = array<i64: 5, 4>}]} {
    %c0 = arith.constant 0 : index
    %c0_0 = arith.constant 0 : index
    %0 = vector.load %arg1[%c0, %c0_0] : memref<5x3xf32, #tpu.memory_space<vmem>>, vector<5x3xf32>
    %c0_1 = arith.constant 0 : index
    %c0_2 = arith.constant 0 : index
    %1 = vector.load %arg2[%c0_1, %c0_2] : memref<3x4xf32, #tpu.memory_space<vmem>>, vector<3x4xf32>
    %c0_3 = arith.constant 0 : index
    %c0_4 = arith.constant 0 : index
    %2 = vector.load %arg3[%c0_3, %c0_4] : memref<1x4xf32, #tpu.memory_space<vmem>>, vector<1x4xf32>
    %3 = vector.shape_cast %2 : vector<1x4xf32> to vector<1x4xf32>
    %4 = vector.broadcast %3 : vector<1x4xf32> to vector<5x4xf32>
    %5 = vector.extract_strided_slice %0 {offsets = [0, 0], sizes = [5, 1], strides = [1, 1]} : vector<5x3xf32> to vector<5x1xf32>
    %6 = vector.extract_strided_slice %1 {offsets = [0, 0], sizes = [1, 4], strides = [1, 1]} : vector<3x4xf32> to vector<1x4xf32>
    %7 = vector.broadcast %5 : vector<5x1xf32> to vector<5x4xf32>
    %8 = vector.broadcast %6 : vector<1x4xf32> to vector<5x4xf32>
    %9 = arith.mulf %7, %8 : vector<5x4xf32>
    %10 = arith.addf %4, %9 : vector<5x4xf32>
    %11 = vector.extract_strided_slice %0 {offsets = [0, 1], sizes = [5, 1], strides = [1, 1]} : vector<5x3xf32> to vector<5x1xf32>
    %12 = vector.extract_strided_slice %1 {offsets = [1, 0], sizes = [1, 4], strides = [1, 1]} : vector<3x4xf32> to vector<1x4xf32>
    %13 = vector.broadcast %11 : vector<5x1xf32> to vector<5x4xf32>
    %14 = vector.broadcast %12 : vector<1x4xf32> to vector<5x4xf32>
    %15 = arith.mulf %13, %14 : vector<5x4xf32>
    %16 = arith.addf %10, %15 : vector<5x4xf32>
    %17 = vector.extract_strided_slice %0 {offsets = [0, 2], sizes = [5, 1], strides = [1, 1]} : vector<5x3xf32> to vector<5x1xf32>
    %18 = vector.extract_strided_slice %1 {offsets = [2, 0], sizes = [1, 4], strides = [1, 1]} : vector<3x4xf32> to vector<1x4xf32>
    %19 = vector.broadcast %17 : vector<5x1xf32> to vector<5x4xf32>
    %20 = vector.broadcast %18 : vector<1x4xf32> to vector<5x4xf32>
    %21 = arith.mulf %19, %20 : vector<5x4xf32>
    %22 = arith.addf %16, %21 : vector<5x4xf32>
    %c0_5 = arith.constant 0 : index
    %c0_6 = arith.constant 0 : index
    %23 = vector.load %arg4[%c0_5, %c0_6] : memref<5x4xf32, #tpu.memory_space<vmem>>, vector<5x4xf32>
    tpu.vector_store %arg4[%c0_5, %c0_6], %22 {strides = array<i32>} : memref<5x4xf32, #tpu.memory_space<vmem>>, vector<5x4xf32>,
    return
  }
  func.func @transform_0(%arg0: i32) -> (i32, i32) {
    %c0_i32 = arith.constant 0 : i32
    %c0_i32_0 = arith.constant 0 : i32
    return %arg0, %c0_i32 : i32, i32
  }
  func.func @transform_1(%arg0: i32) -> (i32, i32) {
    %c0_i32 = arith.constant 0 : i32
    %c0_i32_0 = arith.constant 0 : i32
    %c0_i32_1 = arith.constant 0 : i32
    return %c0_i32, %c0_i32_0 : i32, i32
  }
  func.func @transform_2(%arg0: i32) -> (i32, i32) {
    %c0_i32 = arith.constant 0 : i32
    %c0_i32_0 = arith.constant 0 : i32
    %c0_i32_1 = arith.constant 0 : i32
    return %c0_i32, %c0_i32_0 : i32, i32
  }
  func.func @transform_3(%arg0: i32) -> (i32, i32) {
    %c0_i32 = arith.constant 0 : i32
    %c0_i32_0 = arith.constant 0 : i32
    return %arg0, %c0_i32 : i32, i32
  }
}

</mosaic_0001>

<llo_original>
// kernel: tpu_custom_call.1
$region0: #{tpu_custom_call.1}
  #allocation0 [shape = 'u32[]', space=smem, size = 0x4, offset = 0x4, fixed_abs, tag = 'smem constant byte address 0x4 - core index']
  #allocation1 [shape = 'u32[144,128]{1,0:T(1,128)}', space=vmem, size = 0x12000, scoped, tag = 'internal scratch']
  %s0 = inlined_call_operand.vmem [shape: f32[5,3], index: 0, kind: input, shape index: {}]
  %s1 = inlined_call_operand.vmem [shape: f32[3,4], index: 1, kind: input, shape index: {}]
  %s2 = inlined_call_operand.vmem [shape: f32[1,4], index: 2, kind: input, shape index: {}]
  %s3 = inlined_call_operand.vmem [shape: f32[5,4], index: 3, kind: output, shape index: {}]
  %s4 = sld [smem:[#allocation0]]
  $region22: #{tpu_custom_call.1} parent=0
    _
  %s6 = ssub.s32 1, %s4
  %s7 = scalar_select 0, %s6, %s4
  // Predicated region
  $region2: #{tpu_custom_call.1} parent=0 // pred_check
    _
  $region3: #{tpu_custom_call.1} parent=0 // pred_check_branch
    %9 = sbr.rel (0) target = $region5
  $region4: #{tpu_custom_call.1} parent=0 // pred_region
    _
  $region5: #{tpu_custom_call.1} parent=0 // pred_fallthru
    _
  // Predicated region
  $region6: #{tpu_custom_call.1} parent=0 // pred_check
    _
  $region7: #{tpu_custom_call.1} parent=0 // pred_check_branch
    %11 = sbr.rel (0) target = $region9
  $region8: #{tpu_custom_call.1} parent=0 // pred_region
    _
  $region9: #{tpu_custom_call.1} parent=0 // pred_fallthru
    _
  // Predicated region
  $region10: #{tpu_custom_call.1} parent=0 // pred_check
    _
  $region11: #{tpu_custom_call.1} parent=0 // pred_check_branch
    %13 = sbr.rel (0) target = $region13
  $region12: #{tpu_custom_call.1} parent=0 // pred_region
    _
  $region13: #{tpu_custom_call.1} parent=0 // pred_fallthru
    _
  %v14 = vld [vmem:[%s0] sm:$0x1f]
  %v15 = vld [vmem:[%s1] sm:$0x7]
  %v16 = vld [vmem:[%s2] sm:$0x1]
  %v18 = vlaneseq
  %v19 = vshrl.u32 %v18, 7
  %v20 = vsub.s32 0, %v19
  %v21 = vrot.slane %v16, %v20
  %24 = vset.pattern.permute.xlu0 0
  %25 = vperm.xlu0 %24, %v14
  %v26 = vpop.permute.xlu0 %25
  %v28 = vlaneseq
  %v29 = vshrl.u32 %v28, 7
  %v30 = vsub.s32 0, %v29
  %v31 = vrot.slane %v15, %v30
  %v32 = vmul.f32 %v26, %v31
  %v33 = vadd.f32 %v21, %v32
  %34 = vset.pattern.permute.xlu0 1
  %35 = vperm.xlu0 %34, %v14
  %v36 = vpop.permute.xlu0 %35
  %v38 = vlaneseq
  %v39 = vshrl.u32 %v38, 7
  %v40 = vsub.s32 1, %v39
  %v41 = vrot.slane %v15, %v40
  %v42 = vmul.f32 %v36, %v41
  %v43 = vadd.f32 %v33, %v42
  %44 = vset.pattern.permute.xlu0 2
  %45 = vperm.xlu0 %44, %v14
  %v46 = vpop.permute.xlu0 %45
  %v48 = vlaneseq
  %v49 = vshrl.u32 %v48, 7
  %v50 = vsub.s32 2, %v49
  %v51 = vrot.slane %v15, %v50
  %v52 = vmul.f32 %v46, %v51
  %v53 = vadd.f32 %v43, %v52
  %vm54 = vcmask 28672
  %55 = vst.msk [vmem:[%s3] sm:$0x1f] %vm54, %v53
  // Predicated region
  $region14: #{tpu_custom_call.1} parent=0 // pred_check
    _
  $region15: #{tpu_custom_call.1} parent=0 // pred_check_branch
    %57 = sbr.rel (0) target = $region17
  $region16: #{tpu_custom_call.1} parent=0 // pred_region
    _
  $region17: #{tpu_custom_call.1} parent=0 // pred_fallthru
    _
  // Predicated region
  $region18: #{tpu_custom_call.1} parent=0 // pred_check
    _
  $region19: #{tpu_custom_call.1} parent=0 // pred_check_branch
    %59 = sbr.rel (0) target = $region21
  $region20: #{tpu_custom_call.1} parent=0 // pred_region
    _
  $region21: #{tpu_custom_call.1} parent=0 // pred_fallthru
    _

</llo_original>
